<compile_context>
chip_gen: v7x
topology: tpu7x:2x2x1
jax: 0.10.0
libtpu: 0.0.40
codegen_flags: <defaults>
</compile_context>

<pallas_src>
import functools

import jax
import jax.numpy as jnp
from jax import lax
from jax.experimental import pallas as pl
from jax.experimental.pallas import tpu as pltpu

_LANE = 128
_MAX_TK = 4096


def _cdiv(a, b):
    return (a + b - 1) // b


def _round_up(x, m):
    return ((x + m - 1) // m) * m


def _tpu_vmem_capacity_bytes():
    """Physical VMEM per TensorCore; conservative fallback if the query fails."""
    try:
        info = pltpu.get_tpu_info()
        cap = int(getattr(info, "vmem_capacity_bytes", 0) or 0)
        if cap > 0:
            return cap
    except Exception:
        pass
    return 64 * 2**20  # v7x per-TC size (most restrictive)


def _choose_tk(n, k, itemsize):
    """K-chunk size: lane-aligned, sized so 2 x-chunk buffers fit a per-gen budget."""
    k128 = _round_up(k, _LANE)
    cap = _tpu_vmem_capacity_bytes()
    budget = 6 * 2**20 if cap <= 64 * 2**20 else 12 * 2**20
    tk = budget // (2 * max(n, 8) * itemsize)
    tk = max(_LANE, (tk // _LANE) * _LANE)
    return int(min(tk, k128, _MAX_TK))


def _vmem_limit(need_bytes):
    cap = _tpu_vmem_capacity_bytes()
    ceiling = max(24 * 2**20, cap - 16 * 2**20)  # headroom for Mosaic internal scratch
    return int(min(ceiling, max(24 * 2**20, 2 * need_bytes)))


def _masked_chunk(x_ref, *, tk, k_total, ragged):
    """Load the (n, tk) chunk; zero columns >= k_total (garbage in the OOB tail block)."""
    x = x_ref[...]
    if ragged:
        kk = pl.program_id(0)
        col = kk * tk + lax.broadcasted_iota(jnp.int32, x.shape, 1)
        x = jnp.where(col < k_total, x, jnp.zeros_like(x))
    return x


def _accumulate_gram(x, acc_ref):
    # X @ X.T without materializing a transpose: contract axis 1 of both operands.
    acc_ref[...] += lax.dot_general(
        x, x,
        dimension_numbers=(((1,), (1,)), ((), ())),
        preferred_element_type=jnp.float32,
    )


def _gram_kernel(x_ref, g_ref, *, inv_denom, tk, k_total, ragged):
    kk = pl.program_id(0)

    @pl.when(kk == 0)
    def _init():
        g_ref[...] = jnp.zeros_like(g_ref)

    x = _masked_chunk(x_ref, tk=tk, k_total=k_total, ragged=ragged)
    _accumulate_gram(x, g_ref)  # accumulate directly into the resident f32 output

    @pl.when(kk == pl.num_programs(0) - 1)
    def _finalize():
        g_ref[...] = g_ref[...] * inv_denom


def _style_loss_kernel(style_hbm, x_ref, loss_ref, acc_ref, style_vmem, style_sem,
                       *, inv_denom, inv_nn, tk, k_total, ragged, prefetch_step):
    kk = pl.program_id(0)

    @pl.when(kk == 0)
    def _init():
        acc_ref[...] = jnp.zeros_like(acc_ref)

    # Start the style-Gram HBM->VMEM copy late so it overlaps the tail matmul instead of
    # occupying a pipelined input buffer for the whole reduction.
    @pl.when(kk == prefetch_step)
    def _start_style_dma():
        pltpu.make_async_copy(style_hbm, style_vmem, style_sem).start()

    x = _masked_chunk(x_ref, tk=tk, k_total=k_total, ragged=ragged)
    _accumulate_gram(x, acc_ref)

    @pl.when(kk == pl.num_programs(0) - 1)
    def _finalize():
        pltpu.make_async_copy(style_hbm, style_vmem, style_sem).wait()
        g = acc_ref[...] * inv_denom
        diff = style_vmem[...] - g
        loss_ref[0] = jnp.sum(diff * diff) * inv_nn


def _problem(shape, dtype_name):
    a, b, c, d = shape
    n, k = a * b, c * d
    dtype = jnp.dtype(dtype_name)
    tk = _choose_tk(n, k, dtype.itemsize)
    nk = _cdiv(k, tk)
    ragged = (k % tk) != 0
    return n, k, dtype, tk, nk, ragged


@functools.lru_cache(maxsize=None)
def _build_gram_fn(shape, dtype_name):
    """Returns (jitted fn: (a,b,c,d) array -> (N,N) f32 Gram, N)."""
    a, b, c, d = shape
    n, k, dtype, tk, nk, ragged = _problem(shape, dtype_name)
    inv_denom = 1.0 / float(a * b * c * d)

    kernel = functools.partial(_gram_kernel, inv_denom=inv_denom,
                               tk=tk, k_total=k, ragged=ragged)

    need = 2 * n * tk * dtype.itemsize + 2 * n * n * 4

    call = pl.pallas_call(
        kernel,
        out_shape=jax.ShapeDtypeStruct((n, n), jnp.float32),
        grid_spec=pltpu.PrefetchScalarGridSpec(
            num_scalar_prefetch=0,
            grid=(nk,),
            in_specs=[pl.BlockSpec((n, tk), lambda kk: (0, kk))],
            out_specs=pl.BlockSpec((n, n), lambda kk: (0, 0)),  # resident accumulator
        ),
        compiler_params=pltpu.CompilerParams(
            dimension_semantics=("arbitrary",),
            vmem_limit_bytes=_vmem_limit(need),
        ),
        cost_estimate=pl.CostEstimate(
            flops=2 * n * n * nk * tk,
            transcendentals=0,
            bytes_accessed=n * k * dtype.itemsize + n * n * 4,
        ),
    )

    def fn(x):
        return call(x.reshape(n, k))  # contiguous reshape: no HBM copy

    return jax.jit(fn), n


@functools.lru_cache(maxsize=None)
def _build_style_loss_fn(shape, dtype_name):
    """Returns jitted fn: (style Gram (N,N) f32, x (a,b,c,d)) -> scalar MSE loss."""
    a, b, c, d = shape
    n, k, dtype, tk, nk, ragged = _problem(shape, dtype_name)
    inv_denom = 1.0 / float(a * b * c * d)
    inv_nn = 1.0 / float(n * n)
    prefetch_step = max(nk - 2, 0)

    kernel = functools.partial(
        _style_loss_kernel, inv_denom=inv_denom, inv_nn=inv_nn,
        tk=tk, k_total=k, ragged=ragged, prefetch_step=prefetch_step)

    need = 2 * n * tk * dtype.itemsize + 2 * n * n * 4

    call = pl.pallas_call(
        kernel,
        out_shape=jax.ShapeDtypeStruct((1,), jnp.float32),
        grid_spec=pltpu.PrefetchScalarGridSpec(
            num_scalar_prefetch=0,
            grid=(nk,),
            in_specs=[
                pl.BlockSpec(memory_space=pl.ANY),          # style Gram stays in HBM
                pl.BlockSpec((n, tk), lambda kk: (0, kk)),  # input K-chunk (pipelined)
            ],
            out_specs=pl.BlockSpec(memory_space=pltpu.SMEM),  # scalar loss only
            scratch_shapes=[
                pltpu.VMEM((n, n), jnp.float32),  # f32 Gram accumulator
                pltpu.VMEM((n, n), jnp.float32),  # style Gram landing buffer
                pltpu.SemaphoreType.DMA,          # style DMA completion
            ],
        ),
        compiler_params=pltpu.CompilerParams(
            dimension_semantics=("arbitrary",),
            vmem_limit_bytes=_vmem_limit(need),
        ),
        cost_estimate=pl.CostEstimate(
            flops=2 * n * n * nk * tk + 3 * n * n,
            transcendentals=0,
            bytes_accessed=n * k * dtype.itemsize + 2 * n * n * 4 + 4,
        ),
    )

    def fn(style_gram, x):
        return call(style_gram, x.reshape(n, k))[0]

    return jax.jit(fn)


def gram_matrix(x):
    """Pallas equivalent of Gramm_matrix: (a,b,c,d) -> (a*b, a*b) Gram / (a*b*c*d)."""
    fn, _ = _build_gram_fn(tuple(x.shape), str(x.dtype))
    return fn(x)


class StyleLoss:
    """JAX/Pallas port of Style_Loss."""

    def __init__(self, style):
        shape = tuple(style.shape)
        gram_fn, _ = _build_gram_fn(shape, str(style.dtype))
        self.style = gram_fn(style)   # (N, N) f32, matches PyTorch self.style
        self.loss = None

    def __call__(self, x):
        loss_fn = _build_style_loss_fn(tuple(x.shape), str(x.dtype))
        self.loss = loss_fn(self.style, x)
        return x  # forward returns the input unchanged, like the PyTorch module


if __name__ == "__main__":
    key = jax.random.PRNGKey(0)
    k_style, k_input, k_style2, k_input2 = jax.random.split(key, 4)

    def ref_gram(m):
        aa, bb, cc, dd = m.shape
        v = m.reshape(aa * bb, cc * dd).astype(jnp.float32)
        g = jnp.matmul(v, v.T, precision=lax.Precision.HIGHEST)
        return g / (aa * bb * cc * dd)

    # Primary example (small, aligned K) — mirrors F.mse_loss(Gram(style), Gram(input)).
    a, b, c, d = 2, 4, 16, 16
    style = jax.random.normal(k_style, (a, b, c, d), dtype=jnp.float32)
    x = jax.random.normal(k_input, (a, b, c, d), dtype=jnp.float32)

    module = StyleLoss(style)
    out = jax.block_until_ready(module(x))
    loss = jax.block_until_ready(module.loss)

    ref_loss = jnp.mean((ref_gram(style) - ref_gram(x)) ** 2)
    g_check = jax.block_until_ready(gram_matrix(x))

    assert out.shape == x.shape and jnp.allclose(out, x)
    assert jnp.allclose(g_check, ref_gram(x), rtol=1e-5, atol=1e-6)
    assert jnp.allclose(module.style, ref_gram(style), rtol=1e-5, atol=1e-6)
    assert jnp.allclose(loss, ref_loss, rtol=1e-5, atol=1e-6), (loss, ref_loss)

    # Secondary check: multi-chunk K reduction with a ragged last chunk
    # (exercises the in-kernel column mask and the cross-step style-Gram DMA).
    a2, b2, c2, d2 = 2, 8, 68, 68
    style2 = jax.random.normal(k_style2, (a2, b2, c2, d2), dtype=jnp.float32)
    x2 = jax.random.normal(k_input2, (a2, b2, c2, d2), dtype=jnp.float32)
    module2 = StyleLoss(style2)
    module2(x2)
    loss2 = jax.block_until_ready(module2.loss)
    ref_loss2 = jnp.mean((ref_gram(style2) - ref_gram(x2)) ** 2)
    assert jnp.allclose(loss2, ref_loss2, rtol=1e-3, atol=1e-8), (loss2, ref_loss2)

    print("KERNEL_OK")
</pallas_src>

<mosaic_0001>
module attributes {stable_mosaic.version = 11 : i64} {
  func.func @_gram_kernel(%arg0: i32, %arg1: memref<8x256xf32, #tpu.memory_space<vmem>>, %arg2: memref<8x8xf32, #tpu.memory_space<vmem>>) attributes {dimension_semantics = [#tpu.dimension_semantics<arbitrary>], iteration_bounds = array<i64: 1>, scalar_prefetch = 0 : i64, scratch_operands = 0 : i64, tpu.core_type = #tpu.core_type<tc>, window_params = [{transform_indices = @transform_0, window_bounds = array<i64: 8, 256>}, {pipeline_mode = #tpu.pipeline_mode<synchronous>, transform_indices = @transform_1, window_bounds = array<i64: 8, 8>}]} {
    %c0_i32 = arith.constant 0 : i32
    %0 = arith.cmpi eq, %arg0, %c0_i32 : i32
    %1 = arith.extui %0 : i1 to i32
    %c0_i32_0 = arith.constant 0 : i32
    %2 = arith.cmpi ne, %1, %c0_i32_0 : i32
    scf.if %2 {
      %cst_8 = arith.constant 0.000000e+00 : f32
      %11 = vector.broadcast %cst_8 : f32 to vector<8x8xf32>
      %c0_9 = arith.constant 0 : index
      %c0_10 = arith.constant 0 : index
      %12 = vector.load %arg2[%c0_9, %c0_10] : memref<8x8xf32, #tpu.memory_space<vmem>>, vector<8x8xf32>
      tpu.vector_store %arg2[%c0_9, %c0_10], %11 {strides = array<i32>} : memref<8x8xf32, #tpu.memory_space<vmem>>, vector<8x8xf32>,
    } else {
    }
    %c0 = arith.constant 0 : index
    %c0_1 = arith.constant 0 : index
    %3 = vector.load %arg1[%c0, %c0_1] : memref<8x256xf32, #tpu.memory_space<vmem>>, vector<8x256xf32>
    %c0_2 = arith.constant 0 : index
    %c0_3 = arith.constant 0 : index
    %4 = vector.load %arg2[%c0_2, %c0_3] : memref<8x8xf32, #tpu.memory_space<vmem>>, vector<8x8xf32>
    %cst = arith.constant dense<0.000000e+00> : vector<8x8xf32>
    %5 = tpu.matmul %3, %3, %cst {dimension_numbers = #tpu.dot_dimension_numbers<[1], [1], [0], [0], [0, 0, 1, 0], [], []>} : vector<8x256xf32>, vector<8x256xf32>, vector<8x8xf32> -> vector<8x8xf32>
    %6 = arith.addf %4, %5 : vector<8x8xf32>
    %c0_4 = arith.constant 0 : index
    %c0_5 = arith.constant 0 : index
    %7 = vector.load %arg2[%c0_4, %c0_5] : memref<8x8xf32, #tpu.memory_space<vmem>>, vector<8x8xf32>
    tpu.vector_store %arg2[%c0_4, %c0_5], %6 {strides = array<i32>} : memref<8x8xf32, #tpu.memory_space<vmem>>, vector<8x8xf32>,
    %c0_i32_6 = arith.constant 0 : i32
    %8 = arith.cmpi eq, %arg0, %c0_i32_6 : i32
    %9 = arith.extui %8 : i1 to i32
    %c0_i32_7 = arith.constant 0 : i32
    %10 = arith.cmpi ne, %9, %c0_i32_7 : i32
    scf.if %10 {
      %c0_8 = arith.constant 0 : index
      %c0_9 = arith.constant 0 : index
      %11 = vector.load %arg2[%c0_8, %c0_9] : memref<8x8xf32, #tpu.memory_space<vmem>>, vector<8x8xf32>
      %cst_10 = arith.constant 4.8828125E-4 : f32
      %12 = vector.broadcast %cst_10 : f32 to vector<8x8xf32>
      %13 = arith.mulf %11, %12 : vector<8x8xf32>
      %c0_11 = arith.constant 0 : index
      %c0_12 = arith.constant 0 : index
      %14 = vector.load %arg2[%c0_11, %c0_12] : memref<8x8xf32, #tpu.memory_space<vmem>>, vector<8x8xf32>
      tpu.vector_store %arg2[%c0_11, %c0_12], %13 {strides = array<i32>} : memref<8x8xf32, #tpu.memory_space<vmem>>, vector<8x8xf32>,
    } else {
    }
    return
  }
  func.func @transform_0(%arg0: i32) -> (i32, i32) {
    %c0_i32 = arith.constant 0 : i32
    %c0_i32_0 = arith.constant 0 : i32
    return %c0_i32, %arg0 : i32, i32
  }
  func.func @transform_1(%arg0: i32) -> (i32, i32) {
    %c0_i32 = arith.constant 0 : i32
    %c0_i32_0 = arith.constant 0 : i32
    %c0_i32_1 = arith.constant 0 : i32
    return %c0_i32, %c0_i32_0 : i32, i32
  }
}

</mosaic_0001>

<llo_original>
// kernel: fn.1
$region0: #{fn.1}
  #allocation0 [shape = 'u32[]', space=smem, size = 0x4, offset = 0x4, fixed_abs, tag = 'smem constant byte address 0x4 - core index']
  #allocation1 [shape = 'u32[144,128]{1,0:T(1,128)}', space=vmem, size = 0x12000, scoped, tag = 'internal scratch']
  %s0 = inlined_call_operand.vmem [shape: f32[8,256], index: 0, kind: input, shape index: {}]
  %s1 = inlined_call_operand.hbm [shape: f32[8,8], index: 1, kind: output, shape index: {}]
  %s2 = sld [smem:[#allocation0]]
  $region22: #{fn.1} parent=0
    _
  %s4 = ssub.s32 1, %s2
  %s5 = scalar_select 0, %s4, %s2
  $region1: #{fn.1} parent=0
    #allocation2 [shape = 'u8[4096]{0}', space=vmem, size = 0x1000, scoped, tag = 'output window, operand 0, single buffered']
    #allocation3 [shape = 's32[1]{0}', space=sflag, size = 0x4, scoped, tag = 'scoped memory for fn.1']
    %6 = vsyncpa [#allocation3], 0
    // Predicated region
    $region2: #{fn.1} parent=1 // pred_check
      _
    $region3: #{fn.1} parent=1 // pred_check_branch
      %8 = sbr.rel (0) target = $region5
    $region4: #{fn.1} parent=1 // pred_region
      _
    $region5: #{fn.1} parent=1 // pred_fallthru
      _
    %p9 = scmp.eq.s32.totalorder 0, 0
    // Predicated region
    $region6: #{fn.1} parent=1 // pred_check
      %p10 = pneg %p9
    $region7: #{fn.1} parent=1 // pred_check_branch
      %12 = sbr.rel (%p10) target = $region9
    $region8: #{fn.1} parent=1 // pred_region
      %vm13 = vcmask 64512
      %14 = vst.msk [vmem:[#allocation2] sm:$0xff] %vm13, 0.0
    $region9: #{fn.1} parent=1 // pred_fallthru
      _
    %v15 = vld [vmem:[%s0] sm:$0xff]
    %v16 = vld [vmem:[%s0 + $0x8] sm:$0xff]
    %v17 = vld [vmem:[#allocation2] sm:$0xff]
    %18 = vmatprep.subr.mxu0 %v16
    %19 = vmatpush1.xpose.msra.mxu0 %v15
    %20 = vmatprep.subr.mxu0 0.0
    %21 = vmatpush1.xpose.msra.mxu0 0.0
    %22 = vmatprep.subr.mxu0 0.0
    %23 = vmatpush1.xpose.msra.mxu0 0.0
    %24 = vmatprep.subr.mxu0 0.0
    %25 = vmatpush1.xpose.msra.mxu0 0.0
    %26 = vmatprep.subr.mxu0 0.0
    %27 = vmatpush1.xpose.msra.mxu0 0.0
    %28 = vmatprep.subr.mxu0 0.0
    %29 = vmatpush1.xpose.msra.mxu0 0.0
    %30 = vmatprep.subr.mxu0 0.0
    %31 = vmatpush1.xpose.msra.mxu0 0.0
    %32 = vmatprep.subr.mxu0 0.0
    %33 = vmatpush1.xpose.msra.mxu0 0.0
    %34 = vmatprep.subr.mxu0 0.0
    %35 = vmatpush1.xpose.msra.mxu0 0.0
    %36 = vmatprep.subr.mxu0 0.0
    %37 = vmatpush1.xpose.msra.mxu0 0.0
    %38 = vmatprep.subr.mxu0 0.0
    %39 = vmatpush1.xpose.msra.mxu0 0.0
    %40 = vmatprep.subr.mxu0 0.0
    %41 = vmatpush1.xpose.msra.mxu0 0.0
    %42 = vmatprep.subr.mxu0 0.0
    %43 = vmatpush1.xpose.msra.mxu0 0.0
    %44 = vmatprep.subr.mxu0 0.0
    %45 = vmatpush1.xpose.msra.mxu0 0.0
    %46 = vmatprep.subr.mxu0 0.0
    %47 = vmatpush1.xpose.msra.mxu0 0.0
    %48 = vmatprep.subr.mxu0 0.0
    %49 = vmatpush1.xpose.msra.mxu0 0.0
    %50 = vmatprep.subr.mxu0 0.0
    %51 = vmatpush1.xpose.msra.mxu0 0.0
    %52 = vmatprep.subr.mxu0 0.0
    %53 = vmatpush1.xpose.msra.mxu0 0.0
    %54 = vmatprep.subr.mxu0 0.0
    %55 = vmatpush1.xpose.msra.mxu0 0.0
    %56 = vmatprep.subr.mxu0 0.0
    %57 = vmatpush1.xpose.msra.mxu0 0.0
    %58 = vmatprep.subr.mxu0 0.0
    %59 = vmatpush1.xpose.msra.mxu0 0.0
    %60 = vmatprep.subr.mxu0 0.0
    %61 = vmatpush1.xpose.msra.mxu0 0.0
    %62 = vmatprep.subr.mxu0 0.0
    %63 = vmatpush1.xpose.msra.mxu0 0.0
    %64 = vmatprep.subr.mxu0 0.0
    %65 = vmatpush1.xpose.msra.mxu0 0.0
    %66 = vmatprep.subr.mxu0 0.0
    %67 = vmatpush1.xpose.msra.mxu0 0.0
    %68 = vmatprep.subr.mxu0 0.0
    %69 = vmatpush1.xpose.msra.mxu0 0.0
    %70 = vmatprep.subr.mxu0 0.0
    %71 = vmatpush1.xpose.msra.mxu0 0.0
    %72 = vmatprep.subr.mxu0 0.0
    %73 = vmatpush1.xpose.msra.mxu0 0.0
    %74 = vmatprep.subr.mxu0 0.0
    %75 = vmatpush1.xpose.msra.mxu0 0.0
    %76 = vmatprep.subr.mxu0 0.0
    %77 = vmatpush1.xpose.msra.mxu0 0.0
    %78 = vmatprep.subr.mxu0 0.0
    %79 = vmatpush1.xpose.msra.mxu0 0.0
    %80 = vmatprep.subr.mxu0 0.0
    %81 = vmatpush1.xpose.msra.mxu0 0.0
    %82 = vmatprep.mubr.f32.mxu0 %v16
    %83 = vmatmul.mubr.f32.gmra.mrb[0].mxu0 %v15
    %v84 = vpop.f32.mrb[0].mxu0
    %v85 = vadd.f32 0.0, %v84
    %v86 = vpop.f32.mrb[0].mxu0
    %87 = vdwg.mxu0
    %v88 = vadd.f32 %v17, %v85
    %vm89 = vcmask 64512
    %90 = vst.msk [vmem:[#allocation2] sm:$0xff] %vm89, %v88
    // Predicated region
    $region10: #{fn.1} parent=1 // pred_check
      %p91 = pneg %p9
    $region11: #{fn.1} parent=1 // pred_check_branch
      %93 = sbr.rel (%p91) target = $region13
    $region12: #{fn.1} parent=1 // pred_region
      %v94 = vld [vmem:[#allocation2] sm:$0xff]
      %v95 = vmul.f32 %v94, 0.00048828125
      %96 = vst.msk [vmem:[#allocation2] sm:$0xff] %vm89, %v95
    $region13: #{fn.1} parent=1 // pred_fallthru
      _
    // Predicated region
    $region14: #{fn.1} parent=1 // pred_check
      _
    $region15: #{fn.1} parent=1 // pred_check_branch
      %98 = sbr.rel (0) target = $region17
    $region16: #{fn.1} parent=1 // pred_region
      %s100 = ssub.s32 128, 128
      %101 = vsyncadd [#allocation3], %s100
      %s103 = sshll.u32 [#allocation2], 4
      %s104 = int_to_ptr.vmem [resolvable:$true] %s103
      %106 = dma.vmem_to_hbm [thread:$0]  %s104, 128, %s1, [#allocation3]
    $region17: #{fn.1} parent=1 // pred_fallthru
      _
    // Predicated region
    $region18: #{fn.1} parent=1 // pred_check
      _
    $region19: #{fn.1} parent=1 // pred_check_branch
      %108 = sbr.rel (0) target = $region21
    $region20: #{fn.1} parent=1 // pred_region
      %109 = dma.done [#allocation3], 128
    $region21: #{fn.1} parent=1 // pred_fallthru
      _
    %110 = vsyncpa [#allocation3], 1

</llo_original>
